<compile_context>
chip_gen: v7x
topology: tpu7x:2x2x1
jax: 0.10.0
libtpu: 0.0.40
codegen_flags: <defaults>
</compile_context>

<pallas_src>
import jax
import jax.numpy as jnp
from jax import lax
from jax.experimental import pallas as pl
from jax.experimental.pallas import tpu as pltpu

HIDDEN = 32          # synthetic bert hidden_size
H_PAD = 128          # lane-dense padded hidden dim (multiple of 128 lanes)
POOL_HIDDEN = 512    # nn.Linear(hidden_size, 512)
OUT_DIM = 256        # nn.Linear(512, 256)


def dense_pool_kernel(hs_ref, mask_ref, w1_ref, b1_ref, w2_ref, b2_ref, out_ref):
    hs = hs_ref[...]                      # [Bt, S, H_PAD] f32
    mask = mask_ref[...]                  # [Bt, S] f32 (0/1)

    # hidden_states[mask == 0] = -1e9   (mask broadcast over hidden dim)
    keep = mask[:, :, None] > 0.5
    masked = jnp.where(keep, hs, jnp.float32(-1.0e9))

    # torch.max(hidden_states, dim=1)[0]  -> [Bt, H_PAD]
    pooled = jnp.max(masked, axis=1)

    # nn.Linear(hidden_size, 512): bf16 MXU operands, f32 accumulation.
    h1 = jnp.dot(pooled.astype(jnp.bfloat16), w1_ref[...],
                 preferred_element_type=jnp.float32) + b1_ref[...]

    # nn.GELU() (exact / erf-based, PyTorch default) in f32.
    h1 = 0.5 * h1 * (1.0 + lax.erf(h1 * jnp.float32(0.7071067811865476)))

    # nn.Dropout(0.1): identity at inference time.

    # nn.Linear(512, 256): bf16 MXU operands, f32 accumulation.
    emb = jnp.dot(h1.astype(jnp.bfloat16), w2_ref[...],
                  preferred_element_type=jnp.float32) + b2_ref[...]

    # F.normalize(p=2, dim=1): x / max(||x||_2, 1e-12) == x * rsqrt(max(sumsq, 1e-24))
    sumsq = jnp.sum(emb * emb, axis=1, keepdims=True)
    out_ref[...] = emb * lax.rsqrt(jnp.maximum(sumsq, jnp.float32(1e-24)))


def dense_pool_head(hidden_states, attention_mask, w1_bf16, b1, w2_bf16, b2):
    """hidden_states: [B, S, H] f32, attention_mask: [B, S] f32 -> [B, 256] f32."""
    B, S, H = hidden_states.shape
    # Lane-dense layout: pad hidden dim to 128 (zero pad; w1 is already padded
    # with zero rows, so the padded columns contribute nothing).
    if H < H_PAD:
        hidden_states = jnp.pad(hidden_states, ((0, 0), (0, 0), (0, H_PAD - H)))

    bt = B                 # batch tile: whole batch fits trivially in VMEM here;
    grid = (B // bt,)      # for large B, shrink bt and the grid shards across TCs.

    flops = 2 * B * (H_PAD * POOL_HIDDEN + POOL_HIDDEN * OUT_DIM)
    bytes_accessed = (hidden_states.size * 4 + attention_mask.size * 4
                      + w1_bf16.size * 2 + w2_bf16.size * 2
                      + b1.size * 4 + b2.size * 4 + B * OUT_DIM * 4)
    cost = pl.CostEstimate(flops=flops,
                           transcendentals=B * (POOL_HIDDEN + 1),
                           bytes_accessed=bytes_accessed)

    return pl.pallas_call(
        dense_pool_kernel,
        out_shape=jax.ShapeDtypeStruct((B, OUT_DIM), jnp.float32),
        grid_spec=pltpu.PrefetchScalarGridSpec(
            num_scalar_prefetch=0,
            grid=grid,
            in_specs=[
                pl.BlockSpec((bt, S, H_PAD), lambda i: (i, 0, 0)),
                pl.BlockSpec((bt, S), lambda i: (i, 0)),
                # Weights / biases: same block for every grid step -> resident,
                # DMA'd once.
                pl.BlockSpec((H_PAD, POOL_HIDDEN), lambda i: (0, 0)),
                pl.BlockSpec((1, POOL_HIDDEN), lambda i: (0, 0)),
                pl.BlockSpec((POOL_HIDDEN, OUT_DIM), lambda i: (0, 0)),
                pl.BlockSpec((1, OUT_DIM), lambda i: (0, 0)),
            ],
            out_specs=pl.BlockSpec((bt, OUT_DIM), lambda i: (i, 0)),
        ),
        compiler_params=pltpu.CompilerParams(
            dimension_semantics=("parallel",)),
        cost_estimate=cost,
    )(hidden_states, attention_mask, w1_bf16, b1, w2_bf16, b2)


def synthetic_bert_encoder(input_ids, emb_table, pos_table):
    # TODO(synk): pretrained AutoModel BERT backbone replaced by a deterministic
    # synthetic embedding encoder (no .pt/.pth checkpoint loading in this script).
    hs = emb_table[input_ids] + pos_table[None, : input_ids.shape[1], :]
    return jnp.tanh(hs)


if __name__ == "__main__":
    B, S, VOCAB = 2, 8, 100

    key = jax.random.PRNGKey(0)
    k_emb, k_pos, k_w1, k_b1, k_w2, k_b2, k_ids = jax.random.split(key, 7)

    # Deterministic synthetic "BERT" parameters.
    emb_table = jax.random.normal(k_emb, (VOCAB, HIDDEN), jnp.float32) * 0.02
    pos_table = jax.random.normal(k_pos, (S, HIDDEN), jnp.float32) * 0.02

    # Pool head parameters.  nn.Linear stores weight as [out, in]; we keep
    # [in, out] so the kernel computes x @ W + b (mathematically identical).
    # Weights are stored bf16 (DMA-bytes reduction + native MXU dtype); w1 is
    # zero-padded along the hidden dim to the lane-dense H_PAD.
    w1_f32 = jax.random.normal(k_w1, (HIDDEN, POOL_HIDDEN), jnp.float32) * 0.05
    w1 = jnp.pad(w1_f32, ((0, H_PAD - HIDDEN), (0, 0))).astype(jnp.bfloat16)
    b1 = jax.random.normal(k_b1, (1, POOL_HIDDEN), jnp.float32) * 0.01
    w2 = (jax.random.normal(k_w2, (POOL_HIDDEN, OUT_DIM), jnp.float32) * 0.05
          ).astype(jnp.bfloat16)
    b2 = jax.random.normal(k_b2, (1, OUT_DIM), jnp.float32) * 0.01

    # Inputs: token ids [B, S] and attention mask [B, S] (second row padded).
    input_ids = jax.random.randint(k_ids, (B, S), 0, VOCAB, jnp.int32)
    attention_mask = jnp.array(
        [[1] * S, [1] * (S - 3) + [0] * 3], dtype=jnp.float32
    )

    # "self.model(...)" stand-in (plain JAX glue).
    hidden_states = synthetic_bert_encoder(input_ids, emb_table, pos_table)

    # Pallas hot path: masked max-pool + MLP head + L2 normalize.
    out = dense_pool_head(hidden_states, attention_mask, w1, b1, w2, b2)
    out = jax.block_until_ready(out)

    assert out.shape == (B, OUT_DIM)
    assert bool(jnp.all(jnp.isfinite(out)))
    # Rows should be (approximately) unit-norm after F.normalize.
    norms = jnp.linalg.norm(out, axis=1)
    assert bool(jnp.all(jnp.abs(norms - 1.0) < 1e-3))

    print("KERNEL_OK")
</pallas_src>

<mosaic_0001>
module attributes {stable_mosaic.version = 11 : i64} {
  func.func @dense_pool_kernel(%arg0: i32, %arg1: memref<2x8x128xf32, #tpu.memory_space<vmem>>, %arg2: memref<2x8xf32, #tpu.memory_space<vmem>>, %arg3: memref<128x512xbf16, #tpu.memory_space<vmem>>, %arg4: memref<1x512xf32, #tpu.memory_space<vmem>>, %arg5: memref<512x256xbf16, #tpu.memory_space<vmem>>, %arg6: memref<1x256xf32, #tpu.memory_space<vmem>>, %arg7: memref<2x256xf32, #tpu.memory_space<vmem>>) attributes {dimension_semantics = [#tpu.dimension_semantics<parallel>], iteration_bounds = array<i64: 1>, scalar_prefetch = 0 : i64, scratch_operands = 0 : i64, tpu.core_type = #tpu.core_type<tc>, window_params = [{transform_indices = @transform_0, window_bounds = array<i64: 2, 8, 128>}, {transform_indices = @transform_1, window_bounds = array<i64: 2, 8>}, {pipeline_mode = #tpu.pipeline_mode<synchronous>, transform_indices = @transform_2, window_bounds = array<i64: 128, 512>}, {pipeline_mode = #tpu.pipeline_mode<synchronous>, transform_indices = @transform_3, window_bounds = array<i64: 1, 512>}, {pipeline_mode = #tpu.pipeline_mode<synchronous>, transform_indices = @transform_4, window_bounds = array<i64: 512, 256>}, {pipeline_mode = #tpu.pipeline_mode<synchronous>, transform_indices = @transform_5, window_bounds = array<i64: 1, 256>}, {transform_indices = @transform_6, window_bounds = array<i64: 2, 256>}]} {
    %c0 = arith.constant 0 : index
    %c0_0 = arith.constant 0 : index
    %c0_1 = arith.constant 0 : index
    %0 = vector.load %arg1[%c0, %c0_0, %c0_1] : memref<2x8x128xf32, #tpu.memory_space<vmem>>, vector<2x8x128xf32>
    %c0_2 = arith.constant 0 : index
    %c0_3 = arith.constant 0 : index
    %1 = vector.load %arg2[%c0_2, %c0_3] : memref<2x8xf32, #tpu.memory_space<vmem>>, vector<2x8xf32>
    %2 = vector.shape_cast %1 : vector<2x8xf32> to vector<2x8x1xf32>
    %cst = arith.constant 5.000000e-01 : f32
    %3 = vector.broadcast %cst : f32 to vector<2x8x1xf32>
    %4 = arith.cmpf ogt, %2, %3 : vector<2x8x1xf32>
    %cst_4 = arith.constant -1.000000e+09 : f32
    %5 = vector.shape_cast %4 : vector<2x8x1xi1> to vector<2x8x1xi1>
    %6 = vector.broadcast %5 : vector<2x8x1xi1> to vector<2x8x128xi1>
    %7 = vector.broadcast %cst_4 : f32 to vector<2x8x128xf32>
    %8 = arith.select %6, %0, %7 : vector<2x8x128xi1>, vector<2x8x128xf32>
    %cst_5 = arith.constant dense<0xFF800000> : vector<2x128xf32>
    %9 = vector.multi_reduction <maximumf>, %8, %cst_5 [1] : vector<2x8x128xf32> to vector<2x128xf32>
    %10 = arith.truncf %9 : vector<2x128xf32> to vector<2x128xbf16>
    %c0_6 = arith.constant 0 : index
    %c0_7 = arith.constant 0 : index
    %11 = vector.load %arg3[%c0_6, %c0_7] : memref<128x512xbf16, #tpu.memory_space<vmem>>, vector<128x512xbf16>
    %cst_8 = arith.constant dense<0.000000e+00> : vector<2x512xf32>
    %12 = tpu.matmul %10, %11, %cst_8 {dimension_numbers = #tpu.dot_dimension_numbers<[1], [0], [0], [1], [0, 0, 1, 1], [], []>} : vector<2x128xbf16>, vector<128x512xbf16>, vector<2x512xf32> -> vector<2x512xf32>
    %c0_9 = arith.constant 0 : index
    %c0_10 = arith.constant 0 : index
    %13 = vector.load %arg4[%c0_9, %c0_10] : memref<1x512xf32, #tpu.memory_space<vmem>>, vector<1x512xf32>
    %14 = vector.broadcast %13 : vector<1x512xf32> to vector<2x512xf32>
    %15 = arith.addf %12, %14 : vector<2x512xf32>
    %cst_11 = arith.constant 5.000000e-01 : f32
    %16 = vector.broadcast %cst_11 : f32 to vector<2x512xf32>
    %17 = arith.mulf %16, %15 : vector<2x512xf32>
    %cst_12 = arith.constant 0.707106769 : f32
    %18 = vector.broadcast %cst_12 : f32 to vector<2x512xf32>
    %19 = arith.mulf %15, %18 : vector<2x512xf32>
    %20 = math.erf %19 : vector<2x512xf32>
    %cst_13 = arith.constant 1.000000e+00 : f32
    %21 = vector.broadcast %cst_13 : f32 to vector<2x512xf32>
    %22 = arith.addf %21, %20 : vector<2x512xf32>
    %23 = arith.mulf %17, %22 : vector<2x512xf32>
    %24 = arith.truncf %23 : vector<2x512xf32> to vector<2x512xbf16>
    %c0_14 = arith.constant 0 : index
    %c0_15 = arith.constant 0 : index
    %25 = vector.load %arg5[%c0_14, %c0_15] : memref<512x256xbf16, #tpu.memory_space<vmem>>, vector<512x256xbf16>
    %cst_16 = arith.constant dense<0.000000e+00> : vector<2x256xf32>
    %26 = tpu.matmul %24, %25, %cst_16 {dimension_numbers = #tpu.dot_dimension_numbers<[1], [0], [0], [1], [0, 0, 1, 1], [], []>} : vector<2x512xbf16>, vector<512x256xbf16>, vector<2x256xf32> -> vector<2x256xf32>
    %c0_17 = arith.constant 0 : index
    %c0_18 = arith.constant 0 : index
    %27 = vector.load %arg6[%c0_17, %c0_18] : memref<1x256xf32, #tpu.memory_space<vmem>>, vector<1x256xf32>
    %28 = vector.broadcast %27 : vector<1x256xf32> to vector<2x256xf32>
    %29 = arith.addf %26, %28 : vector<2x256xf32>
    %30 = arith.mulf %29, %29 : vector<2x256xf32>
    %cst_19 = arith.constant dense<0.000000e+00> : vector<2xf32>
    %31 = vector.multi_reduction <add>, %30, %cst_19 [1] : vector<2x256xf32> to vector<2xf32>
    %32 = vector.shape_cast %31 : vector<2xf32> to vector<2x1xf32>
    %cst_20 = arith.constant 1.000000e-24 : f32
    %33 = vector.broadcast %cst_20 : f32 to vector<2x1xf32>
    %34 = arith.maximumf %32, %33 : vector<2x1xf32>
    %35 = math.rsqrt %34 : vector<2x1xf32>
    %36 = vector.broadcast %35 : vector<2x1xf32> to vector<2x256xf32>
    %37 = arith.mulf %29, %36 : vector<2x256xf32>
    %c0_21 = arith.constant 0 : index
    %c0_22 = arith.constant 0 : index
    %38 = vector.load %arg7[%c0_21, %c0_22] : memref<2x256xf32, #tpu.memory_space<vmem>>, vector<2x256xf32>
    tpu.vector_store %arg7[%c0_21, %c0_22], %37 {strides = array<i32>} : memref<2x256xf32, #tpu.memory_space<vmem>>, vector<2x256xf32>,
    return
  }
  func.func @transform_0(%arg0: i32) -> (i32, i32, i32) {
    %c0_i32 = arith.constant 0 : i32
    %c0_i32_0 = arith.constant 0 : i32
    %c0_i32_1 = arith.constant 0 : i32
    return %arg0, %c0_i32, %c0_i32_0 : i32, i32, i32
  }
  func.func @transform_1(%arg0: i32) -> (i32, i32) {
    %c0_i32 = arith.constant 0 : i32
    %c0_i32_0 = arith.constant 0 : i32
    return %arg0, %c0_i32 : i32, i32
  }
  func.func @transform_2(%arg0: i32) -> (i32, i32) {
    %c0_i32 = arith.constant 0 : i32
    %c0_i32_0 = arith.constant 0 : i32
    %c0_i32_1 = arith.constant 0 : i32
    return %c0_i32, %c0_i32_0 : i32, i32
  }
  func.func @transform_3(%arg0: i32) -> (i32, i32) {
    %c0_i32 = arith.constant 0 : i32
    %c0_i32_0 = arith.constant 0 : i32
    %c0_i32_1 = arith.constant 0 : i32
    return %c0_i32, %c0_i32_0 : i32, i32
  }
  func.func @transform_4(%arg0: i32) -> (i32, i32) {
    %c0_i32 = arith.constant 0 : i32
    %c0_i32_0 = arith.constant 0 : i32
    %c0_i32_1 = arith.constant 0 : i32
    return %c0_i32, %c0_i32_0 : i32, i32
  }
  func.func @transform_5(%arg0: i32) -> (i32, i32) {
    %c0_i32 = arith.constant 0 : i32
    %c0_i32_0 = arith.constant 0 : i32
    %c0_i32_1 = arith.constant 0 : i32
    return %c0_i32, %c0_i32_0 : i32, i32
  }
  func.func @transform_6(%arg0: i32) -> (i32, i32) {
    %c0_i32 = arith.constant 0 : i32
    %c0_i32_0 = arith.constant 0 : i32
    return %arg0, %c0_i32 : i32, i32
  }
}

</mosaic_0001>

<llo_original>
// kernel: tpu_custom_call.1
$region0: #{tpu_custom_call.1}
  #allocation0 [shape = 'u32[]', space=smem, size = 0x4, offset = 0x4, fixed_abs, tag = 'smem constant byte address 0x4 - core index']
  #allocation1 [shape = 'u32[144,128]{1,0:T(1,128)}', space=vmem, size = 0x12000, scoped, tag = 'internal scratch']
  %s0 = inlined_call_operand.hbm [shape: f32[2,8,128], index: 0, kind: input, shape index: {}]
  %s1 = inlined_call_operand.vmem [shape: f32[2,8], index: 1, kind: input, shape index: {}]
  %s2 = inlined_call_operand.hbm [shape: bf16[128,512], index: 2, kind: input, shape index: {}]
  %s3 = inlined_call_operand.vmem [shape: f32[1,512], index: 3, kind: input, shape index: {}]
  %s4 = inlined_call_operand.hbm [shape: bf16[512,256], index: 4, kind: input, shape index: {}]
  %s5 = inlined_call_operand.vmem [shape: f32[1,256], index: 5, kind: input, shape index: {}]
  %s6 = inlined_call_operand.hbm [shape: f32[2,256], index: 6, kind: output, shape index: {}]
  %s7 = sld [smem:[#allocation0]]
  $region46: #{tpu_custom_call.1} parent=0
    _
  %s9 = ssub.s32 1, %s7
  %s10 = scalar_select 0, %s9, %s7
  $region1: #{tpu_custom_call.1} parent=0
    #allocation2 [shape = 'u8[8192]{0}', space=vmem, size = 0x2000, scoped, tag = 'input window, operand 0, single buffered']
    #allocation3 [shape = 's32[1]{0}', space=sflag, size = 0x4, scoped, tag = 'scoped memory for tpu_custom_call.1']
    #allocation4 [shape = 's32[1]{0}', space=sflag, size = 0x4, scoped, tag = 'scoped memory for tpu_custom_call.1']
    #allocation5 [shape = 'u8[131072]{0}', space=vmem, size = 0x20000, scoped, tag = 'input window, operand 2, single buffered']
    #allocation6 [shape = 's32[1]{0}', space=sflag, size = 0x4, scoped, tag = 'scoped memory for tpu_custom_call.1']
    #allocation7 [shape = 'u8[262144]{0}', space=vmem, size = 0x40000, scoped, tag = 'input window, operand 4, single buffered']
    #allocation8 [shape = 'u8[2048]{0}', space=vmem, size = 0x800, scoped, tag = 'output window, operand 0, single buffered']
    %11 = vsyncpa [#allocation3], 0
    %12 = vsyncpa [#allocation6], 0
    %13 = vsyncpa [#allocation4], 0
    // Predicated region
    $region2: #{tpu_custom_call.1} parent=1 // pred_check
      _
    $region3: #{tpu_custom_call.1} parent=1 // pred_check_branch
      %15 = sbr.rel (0) target = $region5
    $region4: #{tpu_custom_call.1} parent=1 // pred_region
      %s17 = ssub.s32 256, 256
      %18 = vsyncadd [#allocation3], %s17
      %s19 = sshll.u32 [#allocation2], 4
      %s20 = int_to_ptr.vmem [resolvable:$true] %s19
      %25 = dma.hbm_to_vmem [thread:$0]  %s0, 256, %s20, [#allocation3], 128, 128, 8
    $region5: #{tpu_custom_call.1} parent=1 // pred_fallthru
      _
    // Predicated region
    $region6: #{tpu_custom_call.1} parent=1 // pred_check
      _
    $region7: #{tpu_custom_call.1} parent=1 // pred_check_branch
      %27 = sbr.rel (0) target = $region9
    $region8: #{tpu_custom_call.1} parent=1 // pred_region
      _
    $region9: #{tpu_custom_call.1} parent=1 // pred_fallthru
      _
    // Predicated region
    $region10: #{tpu_custom_call.1} parent=1 // pred_check
      _
    $region11: #{tpu_custom_call.1} parent=1 // pred_check_branch
      %29 = sbr.rel (0) target = $region13
    $region12: #{tpu_custom_call.1} parent=1 // pred_region
      %s31 = ssub.s32 4096, 4096
      %32 = vsyncadd [#allocation6], %s31
      %s33 = sshll.u32 [#allocation5], 4
      %s34 = int_to_ptr.vmem [resolvable:$true] %s33
      %39 = dma.hbm_to_vmem [thread:$0]  %s2, 4096, %s34, [#allocation6], 256, 256, 16
    $region13: #{tpu_custom_call.1} parent=1 // pred_fallthru
      _
    // Predicated region
    $region14: #{tpu_custom_call.1} parent=1 // pred_check
      _
    $region15: #{tpu_custom_call.1} parent=1 // pred_check_branch
      %41 = sbr.rel (0) target = $region17
    $region16: #{tpu_custom_call.1} parent=1 // pred_region
      _
    $region17: #{tpu_custom_call.1} parent=1 // pred_fallthru
      _
    // Predicated region
    $region18: #{tpu_custom_call.1} parent=1 // pred_check
      _
    $region19: #{tpu_custom_call.1} parent=1 // pred_check_branch
      %43 = sbr.rel (0) target = $region21
    $region20: #{tpu_custom_call.1} parent=1 // pred_region
      %s45 = ssub.s32 8192, 8192
      %46 = vsyncadd [#allocation6], %s45
      %s47 = sshll.u32 [#allocation7], 4
      %s48 = int_to_ptr.vmem [resolvable:$true] %s47
      %53 = dma.hbm_to_vmem [thread:$0]  %s4, 8192, %s48, [#allocation6], 128, 128, 8
    $region21: #{tpu_custom_call.1} parent=1 // pred_fallthru
      _
    // Predicated region
    $region22: #{tpu_custom_call.1} parent=1 // pred_check
      _
    $region23: #{tpu_custom_call.1} parent=1 // pred_check_branch
      %55 = sbr.rel (0) target = $region25
    $region24: #{tpu_custom_call.1} parent=1 // pred_region
      _
    $region25: #{tpu_custom_call.1} parent=1 // pred_fallthru
      _
    // Predicated region
    $region26: #{tpu_custom_call.1} parent=1 // pred_check
      _
    $region27: #{tpu_custom_call.1} parent=1 // pred_check_branch
      %57 = sbr.rel (0) target = $region29
    $region28: #{tpu_custom_call.1} parent=1 // pred_region
      %58 = dma.done [#allocation3], 256
    $region29: #{tpu_custom_call.1} parent=1 // pred_fallthru
      _
    // Predicated region
    $region30: #{tpu_custom_call.1} parent=1 // pred_check
      _
    $region31: #{tpu_custom_call.1} parent=1 // pred_check_branch
      %60 = sbr.rel (0) target = $region33
    $region32: #{tpu_custom_call.1} parent=1 // pred_region
      %61 = dma.done [#allocation6], 4096
    $region33: #{tpu_custom_call.1} parent=1 // pred_fallthru
      _
    // Predicated region
    $region34: #{tpu_custom_call.1} parent=1 // pred_check
      _
    $region35: #{tpu_custom_call.1} parent=1 // pred_check_branch
      %63 = sbr.rel (0) target = $region37
    $region36: #{tpu_custom_call.1} parent=1 // pred_region
      %64 = dma.done [#allocation6], 8192
    $region37: #{tpu_custom_call.1} parent=1 // pred_fallthru
      _
    %v66 = vld [vmem:[#allocation2] sm:$0xff]
    %v67 = vld [vmem:[#allocation2 + $0x8] sm:$0xff]
    %v68 = vld [vmem:[%s1] sm:$0x3]
    %v69 = vlaneseq
    %v70 = vshrl.u32 %v69, 7
    %v71 = vsub.s32 0, %v70
    %v72 = vrot.slane %v68, %v71
    %74 = vbcast.lane.b32.xlu0 %v72, 256
    %v75 = vpop.permute.xlu0 %74
    %v76 = vlaneseq
    %v77 = vshrl.u32 %v76, 7
    %v78 = vsub.s32 1, %v77
    %v79 = vrot.slane %v68, %v78
    %81 = vbcast.lane.b32.xlu0 %v79, 256
    %v82 = vpop.permute.xlu0 %81
    %vm83 = vcmp.gt.f32.partialorder %v75, 0.5
    %vm84 = vcmp.gt.f32.partialorder %v82, 0.5
    %v85 = vsel %vm83, 1, 0
    %v86 = vsel %vm84, 1, 0
    %vm87 = vcmp.eq.s32.totalorder %v85, 1
    %vm88 = vcmp.eq.s32.totalorder %v86, 1
    %v89 = vsel %vm87, %v66, -1e+09
    %v90 = vsel %vm88, %v67, -1e+09
    %v91 = vrot.slane %v89, 4
    %v92 = vmax.f32 %v89, %v91
    %v93 = vrot.slane %v92, 2
    %v94 = vmax.f32 %v92, %v93
    %v95 = vrot.slane %v94, 1
    %v96 = vmax.f32 %v94, %v95
    %v97 = vrot.slane %v90, 4
    %v98 = vmax.f32 %v90, %v97
    %v99 = vrot.slane %v98, 2
    %v100 = vmax.f32 %v98, %v99
    %v101 = vrot.slane %v100, 1
    %v102 = vmax.f32 %v100, %v101
    %v103 = vpack.c.bf16 %v96, %v96
    %v104 = vpack.c.bf16 %v102, %v102
    %v105 = vld [vmem:[#allocation5] sm:$0xff]
    %v106 = vld [vmem:[#allocation5 + $0x8] sm:$0xff]
    %v107 = vld [vmem:[#allocation5 + $0x10] sm:$0xff]
    %v108 = vld [vmem:[#allocation5 + $0x18] sm:$0xff]
    %v109 = vld [vmem:[#allocation5 + $0x20] sm:$0xff]
    %v110 = vld [vmem:[#allocation5 + $0x28] sm:$0xff]
    %v111 = vld [vmem:[#allocation5 + $0x30] sm:$0xff]
    %v112 = vld [vmem:[#allocation5 + $0x38] sm:$0xff]
    %v113 = vld [vmem:[#allocation5 + $0x40] sm:$0xff]
    %v114 = vld [vmem:[#allocation5 + $0x48] sm:$0xff]
    %v115 = vld [vmem:[#allocation5 + $0x50] sm:$0xff]
    %v116 = vld [vmem:[#allocation5 + $0x58] sm:$0xff]
    %v117 = vld [vmem:[#allocation5 + $0x60] sm:$0xff]
    %v118 = vld [vmem:[#allocation5 + $0x68] sm:$0xff]
    %v119 = vld [vmem:[#allocation5 + $0x70] sm:$0xff]
    %v120 = vld [vmem:[#allocation5 + $0x78] sm:$0xff]
    %v121 = vld [vmem:[#allocation5 + $0x80] sm:$0xff]
    %v122 = vld [vmem:[#allocation5 + $0x88] sm:$0xff]
    %v123 = vld [vmem:[#allocation5 + $0x90] sm:$0xff]
    %v124 = vld [vmem:[#allocation5 + $0x98] sm:$0xff]
    %v125 = vld [vmem:[#allocation5 + $0xa0] sm:$0xff]
    %v126 = vld [vmem:[#allocation5 + $0xa8] sm:$0xff]
    %v127 = vld [vmem:[#allocation5 + $0xb0] sm:$0xff]
    %v128 = vld [vmem:[#allocation5 + $0xb8] sm:$0xff]
    %v129 = vld [vmem:[#allocation5 + $0xc0] sm:$0xff]
    %v130 = vld [vmem:[#allocation5 + $0xc8] sm:$0xff]
    %v131 = vld [vmem:[#allocation5 + $0xd0] sm:$0xff]
    %v132 = vld [vmem:[#allocation5 + $0xd8] sm:$0xff]
    %v133 = vld [vmem:[#allocation5 + $0xe0] sm:$0xff]
    %v134 = vld [vmem:[#allocation5 + $0xe8] sm:$0xff]
    %v135 = vld [vmem:[#allocation5 + $0xf0] sm:$0xff]
    %v136 = vld [vmem:[#allocation5 + $0xf8] sm:$0xff]
    %v137 = vld [vmem:[%s3] sm:$0xf]
    %v139 = vlaneseq
    %v140 = vshrl.u32 %v139, 7
    %v141 = vsub.s32 0, %v140
    %v142 = vrot.slane %v137, %v141
    %v143 = vlaneseq
    %v144 = vshrl.u32 %v143, 7
    %v145 = vsub.s32 1, %v144
    %v146 = vrot.slane %v137, %v145
    %v147 = vlaneseq
    %v148 = vshrl.u32 %v147, 7
    %v149 = vsub.s32 2, %v148
    %v150 = vrot.slane %v137, %v149
    %v151 = vlaneseq
    %v152 = vshrl.u32 %v151, 7
    %v153 = vsub.s32 3, %v152
    %v154 = vrot.slane %v137, %v153
    %v161 = vunpack.c.l.b16 %v103
    %v162 = vunpack.c.l.b16 %v104
    %vm163 = vcmask 1041409
    %v164 = vsel %vm163, %v162, %v161
    %v165 = vpack.c.b16 %v164, %v164
    %v199 = vunpack.c.l.b16 %v105
    %v200 = vunpack.c.h.b16 %v105
    %v201 = vunpack.c.l.b16 %v106
    %v202 = vunpack.c.h.b16 %v106
    %v203 = vunpack.c.l.b16 %v107
    %v204 = vunpack.c.h.b16 %v107
    %v205 = vunpack.c.l.b16 %v108
    %v206 = vunpack.c.h.b16 %v108
    %v207 = vunpack.c.l.b16 %v109
    %v208 = vunpack.c.h.b16 %v109
    %v209 = vunpack.c.l.b16 %v110
    %v210 = vunpack.c.h.b16 %v110
    %v211 = vunpack.c.l.b16 %v111
    %v212 = vunpack.c.h.b16 %v111
    %v213 = vunpack.c.l.b16 %v112
    %v214 = vunpack.c.h.b16 %v112
    %v215 = vunpack.c.l.b16 %v113
    %v216 = vunpack.c.h.b16 %v113
    %v217 = vunpack.c.l.b16 %v114
    %v218 = vunpack.c.h.b16 %v114
    %v219 = vunpack.c.l.b16 %v115
    %v220 = vunpack.c.h.b16 %v115
    %v221 = vunpack.c.l.b16 %v116
    %v222 = vunpack.c.h.b16 %v116
    %v223 = vunpack.c.l.b16 %v117
    %v224 = vunpack.c.h.b16 %v117
    %v225 = vunpack.c.l.b16 %v118
    %v226 = vunpack.c.h.b16 %v118
    %v227 = vunpack.c.l.b16 %v119
    %v228 = vunpack.c.h.b16 %v119
    %v229 = vunpack.c.l.b16 %v120
    %v230 = vunpack.c.h.b16 %v120
    %v231 = vunpack.c.l.b16 %v121
    %v232 = vunpack.c.h.b16 %v121
    %v233 = vunpack.c.l.b16 %v122
    %v234 = vunpack.c.h.b16 %v122
    %v235 = vunpack.c.l.b16 %v123
    %v236 = vunpack.c.h.b16 %v123
    %v237 = vunpack.c.l.b16 %v124
    %v238 = vunpack.c.h.b16 %v124
    %v239 = vunpack.c.l.b16 %v125
    %v240 = vunpack.c.h.b16 %v125
    %v241 = vunpack.c.l.b16 %v126
    %v242 = vunpack.c.h.b16 %v126
    %v243 = vunpack.c.l.b16 %v127
    %v244 = vunpack.c.h.b16 %v127
    %v245 = vunpack.c.l.b16 %v128
    %v246 = vunpack.c.h.b16 %v128
    %v247 = vunpack.c.l.b16 %v129
    %v248 = vunpack.c.h.b16 %v129
    %v249 = vunpack.c.l.b16 %v130
    %v250 = vunpack.c.h.b16 %v130
    %v251 = vunpack.c.l.b16 %v131
    %v252 = vunpack.c.h.b16 %v131
    %v253 = vunpack.c.l.b16 %v132
    %v254 = vunpack.c.h.b16 %v132
    %v255 = vunpack.c.l.b16 %v133
    %v256 = vunpack.c.h.b16 %v133
    %v257 = vunpack.c.l.b16 %v134
    %v258 = vunpack.c.h.b16 %v134
    %v259 = vunpack.c.l.b16 %v135
    %v260 = vunpack.c.h.b16 %v135
    %v261 = vunpack.c.l.b16 %v136
    %v262 = vunpack.c.h.b16 %v136
    %v263 = vpack.c.b16 %v203, %v199
    %v264 = vpack.c.b16 %v204, %v200
    %v265 = vpack.c.b16 %v205, %v201
    %v266 = vpack.c.b16 %v206, %v202
    %v267 = vpack.c.b16 %v211, %v207
    %v268 = vpack.c.b16 %v212, %v208
    %v269 = vpack.c.b16 %v213, %v209
    %v270 = vpack.c.b16 %v214, %v210
    %v271 = vpack.c.b16 %v219, %v215
    %v272 = vpack.c.b16 %v220, %v216
    %v273 = vpack.c.b16 %v221, %v217
    %v274 = vpack.c.b16 %v222, %v218
    %v275 = vpack.c.b16 %v227, %v223
    %v276 = vpack.c.b16 %v228, %v224
    %v277 = vpack.c.b16 %v229, %v225
    %v278 = vpack.c.b16 %v230, %v226
    %v279 = vpack.c.b16 %v235, %v231
    %v280 = vpack.c.b16 %v236, %v232
    %v281 = vpack.c.b16 %v237, %v233
    %v282 = vpack.c.b16 %v238, %v234
    %v283 = vpack.c.b16 %v243, %v239
    %v284 = vpack.c.b16 %v244, %v240
    %v285 = vpack.c.b16 %v245, %v241
    %v286 = vpack.c.b16 %v246, %v242
    %v287 = vpack.c.b16 %v251, %v247
    %v288 = vpack.c.b16 %v252, %v248
    %v289 = vpack.c.b16 %v253, %v249
    %v290 = vpack.c.b16 %v254, %v250
    %v291 = vpack.c.b16 %v259, %v255
    %v292 = vpack.c.b16 %v260, %v256
    %v293 = vpack.c.b16 %v261, %v257
    %v294 = vpack.c.b16 %v262, %v258
    %327 = vmatprep.subr.bf16.mxu0 %v264
    %328 = vmatpush1.bf16.msra.mxu0 %v263
    %329 = vmatprep.subr.bf16.mxu0 %v268
    %330 = vmatpush1.bf16.msra.mxu0 %v267
    %331 = vmatprep.subr.bf16.mxu0 %v272
    %332 = vmatpush1.bf16.msra.mxu0 %v271
    %333 = vmatprep.subr.bf16.mxu0 %v276
    %334 = vmatpush1.bf16.msra.mxu0 %v275
    %335 = vmatprep.subr.bf16.mxu0 %v280
    %336 = vmatpush1.bf16.msra.mxu0 %v279
    %337 = vmatprep.subr.bf16.mxu0 %v284
    %338 = vmatpush1.bf16.msra.mxu0 %v283
    %339 = vmatprep.subr.bf16.mxu0 %v288
    %340 = vmatpush1.bf16.msra.mxu0 %v287
    %341 = vmatprep.subr.bf16.mxu0 %v292
    %342 = vmatpush1.bf16.msra.mxu0 %v291
    %343 = vmatprep.subr.bf16.mxu0 0
    %344 = vmatpush1.bf16.msra.mxu0 0
    %345 = vmatprep.subr.bf16.mxu0 0
    %346 = vmatpush1.bf16.msra.mxu0 0
    %347 = vmatprep.subr.bf16.mxu0 0
    %348 = vmatpush1.bf16.msra.mxu0 0
    %349 = vmatprep.subr.bf16.mxu0 0
    %350 = vmatpush1.bf16.msra.mxu0 0
    %351 = vmatprep.subr.bf16.mxu0 0
    %352 = vmatpush1.bf16.msra.mxu0 0
    %353 = vmatprep.subr.bf16.mxu0 0
    %354 = vmatpush1.bf16.msra.mxu0 0
    %355 = vmatprep.subr.bf16.mxu0 0
    %356 = vmatpush1.bf16.msra.mxu0 0
    %357 = vmatprep.subr.bf16.mxu0 0
    %358 = vmatpush1.bf16.msra.mxu0 0
    %359 = vmatprep.mubr.bf16.mxu0 0
    %360 = vmatmul.mubr.bf16.gmra.mrb[0].mxu0 %v165
    %v361 = vpop.f32.mrb[0].mxu0
    %v362 = vadd.f32 %v142, %v361
    %v363 = vpop.f32.mrb[0].mxu0
    %v364 = vadd.f32 %v146, %v363
    %v365 = vpop.f32.mrb[0].mxu0
    %v366 = vpop.f32.mrb[0].mxu0
    %367 = vdwg.mxu0
    %368 = vmatprep.subr.bf16.mxu0 %v266
    %369 = vmatpush1.bf16.msra.mxu0 %v265
    %370 = vmatprep.subr.bf16.mxu0 %v270
    %371 = vmatpush1.bf16.msra.mxu0 %v269
    %372 = vmatprep.subr.bf16.mxu0 %v274
    %373 = vmatpush1.bf16.msra.mxu0 %v273
    %374 = vmatprep.subr.bf16.mxu0 %v278
    %375 = vmatpush1.bf16.msra.mxu0 %v277
    %376 = vmatprep.subr.bf16.mxu0 %v282
    %377 = vmatpush1.bf16.msra.mxu0 %v281
    %378 = vmatprep.subr.bf16.mxu0 %v286
    %379 = vmatpush1.bf16.msra.mxu0 %v285
    %380 = vmatprep.subr.bf16.mxu0 %v290
    %381 = vmatpush1.bf16.msra.mxu0 %v289
    %382 = vmatprep.subr.bf16.mxu0 %v294
    %383 = vmatpush1.bf16.msra.mxu0 %v293
    %384 = vmatprep.subr.bf16.mxu0 0
    %385 = vmatpush1.bf16.msra.mxu0 0
    %386 = vmatprep.subr.bf16.mxu0 0
    %387 = vmatpush1.bf16.msra.mxu0 0
    %388 = vmatprep.subr.bf16.mxu0 0
    %389 = vmatpush1.bf16.msra.mxu0 0
    %390 = vmatprep.subr.bf16.mxu0 0
    %391 = vmatpush1.bf16.msra.mxu0 0
    %392 = vmatprep.subr.bf16.mxu0 0
    %393 = vmatpush1.bf16.msra.mxu0 0
    %394 = vmatprep.subr.bf16.mxu0 0
    %395 = vmatpush1.bf16.msra.mxu0 0
    %396 = vmatprep.subr.bf16.mxu0 0
    %397 = vmatpush1.bf16.msra.mxu0 0
    %398 = vmatprep.subr.bf16.mxu0 0
    %399 = vmatpush1.bf16.msra.mxu0 0
    %400 = vmatprep.mubr.bf16.mxu0 0
    %401 = vmatmul.mubr.bf16.gmra.mrb[0].mxu0 %v165
    %v402 = vpop.f32.mrb[0].mxu0
    %v403 = vadd.f32 %v150, %v402
    %v404 = vpop.f32.mrb[0].mxu0
    %v405 = vadd.f32 %v154, %v404
    %v406 = vpop.f32.mrb[0].mxu0
    %v407 = vpop.f32.mrb[0].mxu0
    %408 = vdwg.mxu0
    %v409 = vmul.f32 %v362, 0.5
    %v410 = vmul.f32 %v364, 0.5
    %v411 = vmul.f32 %v403, 0.5
    %v412 = vmul.f32 %v405, 0.5
    %v413 = vmul.f32 %v362, 0.70710677
    %v414 = vmul.f32 %v364, 0.70710677
    %v415 = vmul.f32 %v403, 0.70710677
    %v416 = vmul.f32 %v405, 0.70710677
    %v417 = verf.f32.pop %v413
    %v418 = verf.f32.pop %v414
    %v419 = verf.f32.pop %v415
    %v420 = verf.f32.pop %v416
    %v421 = vadd.f32 %v417, 1.0
    %v422 = vadd.f32 %v418, 1.0
    %v423 = vadd.f32 %v419, 1.0
    %v424 = vadd.f32 %v420, 1.0
    %v425 = vmul.f32 %v409, %v421
    %v426 = vmul.f32 %v410, %v422
    %v427 = vmul.f32 %v411, %v423
    %v428 = vmul.f32 %v412, %v424
    %v429 = vpack.c.bf16 %v425, %v425
    %v430 = vpack.c.bf16 %v426, %v426
    %v431 = vpack.c.bf16 %v427, %v427
    %v432 = vpack.c.bf16 %v428, %v428
    %v433 = vld [vmem:[#allocation7] sm:$0xff]
    %v434 = vld [vmem:[#allocation7 + $0x8] sm:$0xff]
    %v435 = vld [vmem:[#allocation7 + $0x10] sm:$0xff]
    %v436 = vld [vmem:[#allocation7 + $0x18] sm:$0xff]
    %v437 = vld [vmem:[#allocation7 + $0x20] sm:$0xff]
    %v438 = vld [vmem:[#allocation7 + $0x28] sm:$0xff]
    %v439 = vld [vmem:[#allocation7 + $0x30] sm:$0xff]
    %v440 = vld [vmem:[#allocation7 + $0x38] sm:$0xff]
    %v441 = vld [vmem:[#allocation7 + $0x40] sm:$0xff]
    %v442 = vld [vmem:[#allocation7 + $0x48] sm:$0xff]
    %v443 = vld [vmem:[#allocation7 + $0x50] sm:$0xff]
    %v444 = vld [vmem:[#allocation7 + $0x58] sm:$0xff]
    %v445 = vld [vmem:[#allocation7 + $0x60] sm:$0xff]
    %v446 = vld [vmem:[#allocation7 + $0x68] sm:$0xff]
    %v447 = vld [vmem:[#allocation7 + $0x70] sm:$0xff]
    %v448 = vld [vmem:[#allocation7 + $0x78] sm:$0xff]
    %v449 = vld [vmem:[#allocation7 + $0x80] sm:$0xff]
    %v450 = vld [vmem:[#allocation7 + $0x88] sm:$0xff]
    %v451 = vld [vmem:[#allocation7 + $0x90] sm:$0xff]
    %v452 = vld [vmem:[#allocation7 + $0x98] sm:$0xff]
    %v453 = vld [vmem:[#allocation7 + $0xa0] sm:$0xff]
    %v454 = vld [vmem:[#allocation7 + $0xa8] sm:$0xff]
    %v455 = vld [vmem:[#allocation7 + $0xb0] sm:$0xff]
    %v456 = vld [vmem:[#allocation7 + $0xb8] sm:$0xff]
    %v457 = vld [vmem:[#allocation7 + $0xc0] sm:$0xff]
    %v458 = vld [vmem:[#allocation7 + $0xc8] sm:$0xff]
    %v459 = vld [vmem:[#allocation7 + $0xd0] sm:$0xff]
    %v460 = vld [vmem:[#allocation7 + $0xd8] sm:$0xff]
    %v461 = vld [vmem:[#allocation7 + $0xe0] sm:$0xff]
    %v462 = vld [vmem:[#allocation7 + $0xe8] sm:$0xff]
    %v463 = vld [vmem:[#allocation7 + $0xf0] sm:$0xff]
    %v464 = vld [vmem:[#allocation7 + $0xf8] sm:$0xff]
    %v465 = vld [vmem:[#allocation7 + $0x100] sm:$0xff]
    %v466 = vld [vmem:[#allocation7 + $0x108] sm:$0xff]
    %v467 = vld [vmem:[#allocation7 + $0x110] sm:$0xff]
    %v468 = vld [vmem:[#allocation7 + $0x118] sm:$0xff]
    %v469 = vld [vmem:[#allocation7 + $0x120] sm:$0xff]
    %v470 = vld [vmem:[#allocation7 + $0x128] sm:$0xff]
    %v471 = vld [vmem:[#allocation7 + $0x130] sm:$0xff]
    %v472 = vld [vmem:[#allocation7 + $0x138] sm:$0xff]
    %v473 = vld [vmem:[#allocation7 + $0x140] sm:$0xff]
    %v474 = vld [vmem:[#allocation7 + $0x148] sm:$0xff]
    %v475 = vld [vmem:[#allocation7 + $0x150] sm:$0xff]
    %v476 = vld [vmem:[#allocation7 + $0x158] sm:$0xff]
    %v477 = vld [vmem:[#allocation7 + $0x160] sm:$0xff]
    %v478 = vld [vmem:[#allocation7 + $0x168] sm:$0xff]
    %v479 = vld [vmem:[#allocation7 + $0x170] sm:$0xff]
    %v480 = vld [vmem:[#allocation7 + $0x178] sm:$0xff]
    %v481 = vld [vmem:[#allocation7 + $0x180] sm:$0xff]
    %v482 = vld [vmem:[#allocation7 + $0x188] sm:$0xff]
    %v483 = vld [vmem:[#allocation7 + $0x190] sm:$0xff]
    %v484 = vld [vmem:[#allocation7 + $0x198] sm:$0xff]
    %v485 = vld [vmem:[#allocation7 + $0x1a0] sm:$0xff]
    %v486 = vld [vmem:[#allocation7 + $0x1a8] sm:$0xff]
    %v487 = vld [vmem:[#allocation7 + $0x1b0] sm:$0xff]
    %v488 = vld [vmem:[#allocation7 + $0x1b8] sm:$0xff]
    %v489 = vld [vmem:[#allocation7 + $0x1c0] sm:$0xff]
    %v490 = vld [vmem:[#allocation7 + $0x1c8] sm:$0xff]
    %v491 = vld [vmem:[#allocation7 + $0x1d0] sm:$0xff]
    %v492 = vld [vmem:[#allocation7 + $0x1d8] sm:$0xff]
    %v493 = vld [vmem:[#allocation7 + $0x1e0] sm:$0xff]
    %v494 = vld [vmem:[#allocation7 + $0x1e8] sm:$0xff]
    %v495 = vld [vmem:[#allocation7 + $0x1f0] sm:$0xff]
    %v496 = vld [vmem:[#allocation7 + $0x1f8] sm:$0xff]
    %v497 = vld [vmem:[%s5] sm:$0x3]
    %v499 = vlaneseq
    %v500 = vshrl.u32 %v499, 7
    %v501 = vsub.s32 0, %v500
    %v502 = vrot.slane %v497, %v501
    %v503 = vlaneseq
    %v504 = vshrl.u32 %v503, 7
    %v505 = vsub.s32 1, %v504
    %v506 = vrot.slane %v497, %v505
    %v573 = vunpack.c.l.b16 %v433
    %v574 = vunpack.c.h.b16 %v433
    %v575 = vunpack.c.l.b16 %v434
    %v576 = vunpack.c.h.b16 %v434
    %v577 = vunpack.c.l.b16 %v435
    %v578 = vunpack.c.h.b16 %v435
    %v579 = vunpack.c.l.b16 %v436
    %v580 = vunpack.c.h.b16 %v436
    %v581 = vunpack.c.l.b16 %v437
    %v582 = vunpack.c.h.b16 %v437
    %v583 = vunpack.c.l.b16 %v438
    %v584 = vunpack.c.h.b16 %v438
    %v585 = vunpack.c.l.b16 %v439
    %v586 = vunpack.c.h.b16 %v439
    %v587 = vunpack.c.l.b16 %v440
    %v588 = vunpack.c.h.b16 %v440
    %v589 = vunpack.c.l.b16 %v441
    %v590 = vunpack.c.h.b16 %v441
    %v591 = vunpack.c.l.b16 %v442
    %v592 = vunpack.c.h.b16 %v442
    %v593 = vunpack.c.l.b16 %v443
    %v594 = vunpack.c.h.b16 %v443
    %v595 = vunpack.c.l.b16 %v444
    %v596 = vunpack.c.h.b16 %v444
    %v597 = vunpack.c.l.b16 %v445
    %v598 = vunpack.c.h.b16 %v445
    %v599 = vunpack.c.l.b16 %v446
    %v600 = vunpack.c.h.b16 %v446
    %v601 = vunpack.c.l.b16 %v447
    %v602 = vunpack.c.h.b16 %v447
    %v603 = vunpack.c.l.b16 %v448
    %v604 = vunpack.c.h.b16 %v448
    %v605 = vunpack.c.l.b16 %v449
    %v606 = vunpack.c.h.b16 %v449
    %v607 = vunpack.c.l.b16 %v450
    %v608 = vunpack.c.h.b16 %v450
    %v609 = vunpack.c.l.b16 %v451
    %v610 = vunpack.c.h.b16 %v451
    %v611 = vunpack.c.l.b16 %v452
    %v612 = vunpack.c.h.b16 %v452
    %v613 = vunpack.c.l.b16 %v453
    %v614 = vunpack.c.h.b16 %v453
    %v615 = vunpack.c.l.b16 %v454
    %v616 = vunpack.c.h.b16 %v454
    %v617 = vunpack.c.l.b16 %v455
    %v618 = vunpack.c.h.b16 %v455
    %v619 = vunpack.c.l.b16 %v456
    %v620 = vunpack.c.h.b16 %v456
    %v621 = vunpack.c.l.b16 %v457
    %v622 = vunpack.c.h.b16 %v457
    %v623 = vunpack.c.l.b16 %v458
    %v624 = vunpack.c.h.b16 %v458
    %v625 = vunpack.c.l.b16 %v459
    %v626 = vunpack.c.h.b16 %v459
    %v627 = vunpack.c.l.b16 %v460
    %v628 = vunpack.c.h.b16 %v460
    %v629 = vunpack.c.l.b16 %v461
    %v630 = vunpack.c.h.b16 %v461
    %v631 = vunpack.c.l.b16 %v462
    %v632 = vunpack.c.h.b16 %v462
    %v633 = vunpack.c.l.b16 %v463
    %v634 = vunpack.c.h.b16 %v463
    %v635 = vunpack.c.l.b16 %v464
    %v636 = vunpack.c.h.b16 %v464
    %v637 = vunpack.c.l.b16 %v465
    %v638 = vunpack.c.h.b16 %v465
    %v639 = vunpack.c.l.b16 %v466
    %v640 = vunpack.c.h.b16 %v466
    %v641 = vunpack.c.l.b16 %v467
    %v642 = vunpack.c.h.b16 %v467
    %v643 = vunpack.c.l.b16 %v468
    %v644 = vunpack.c.h.b16 %v468
    %v645 = vunpack.c.l.b16 %v469
    %v646 = vunpack.c.h.b16 %v469
    %v647 = vunpack.c.l.b16 %v470
    %v648 = vunpack.c.h.b16 %v470
    %v649 = vunpack.c.l.b16 %v471
    %v650 = vunpack.c.h.b16 %v471
    %v651 = vunpack.c.l.b16 %v472
    %v652 = vunpack.c.h.b16 %v472
    %v653 = vunpack.c.l.b16 %v473
    %v654 = vunpack.c.h.b16 %v473
    %v655 = vunpack.c.l.b16 %v474
    %v656 = vunpack.c.h.b16 %v474
    %v657 = vunpack.c.l.b16 %v475
    %v658 = vunpack.c.h.b16 %v475
    %v659 = vunpack.c.l.b16 %v476
    %v660 = vunpack.c.h.b16 %v476
    %v661 = vunpack.c.l.b16 %v477
    %v662 = vunpack.c.h.b16 %v477
    %v663 = vunpack.c.l.b16 %v478
    %v664 = vunpack.c.h.b16 %v478
    %v665 = vunpack.c.l.b16 %v479
    %v666 = vunpack.c.h.b16 %v479
    %v667 = vunpack.c.l.b16 %v480
    %v668 = vunpack.c.h.b16 %v480
    %v669 = vunpack.c.l.b16 %v481
    %v670 = vunpack.c.h.b16 %v481
    %v671 = vunpack.c.l.b16 %v482
    %v672 = vunpack.c.h.b16 %v482
    %v673 = vunpack.c.l.b16 %v483
    %v674 = vunpack.c.h.b16 %v483
    %v675 = vunpack.c.l.b16 %v484
    %v676 = vunpack.c.h.b16 %v484
    %v677 = vunpack.c.l.b16 %v485
    %v678 = vunpack.c.h.b16 %v485
    %v679 = vunpack.c.l.b16 %v486
    %v680 = vunpack.c.h.b16 %v486
    %v681 = vunpack.c.l.b16 %v487
    %v682 = vunpack.c.h.b16 %v487
    %v683 = vunpack.c.l.b16 %v488
    %v684 = vunpack.c.h.b16 %v488
    %v685 = vunpack.c.l.b16 %v489
    %v686 = vunpack.c.h.b16 %v489
    %v687 = vunpack.c.l.b16 %v490
    %v688 = vunpack.c.h.b16 %v490
    %v689 = vunpack.c.l.b16 %v491
    %v690 = vunpack.c.h.b16 %v491
    %v691 = vunpack.c.l.b16 %v492
    %v692 = vunpack.c.h.b16 %v492
    %v693 = vunpack.c.l.b16 %v493
    %v694 = vunpack.c.h.b16 %v493
    %v695 = vunpack.c.l.b16 %v494
    %v696 = vunpack.c.h.b16 %v494
    %v697 = vunpack.c.l.b16 %v495
    %v698 = vunpack.c.h.b16 %v495
    %v699 = vunpack.c.l.b16 %v496
    %v700 = vunpack.c.h.b16 %v496
    %v701 = vpack.c.b16 %v575, %v573
    %v702 = vpack.c.b16 %v576, %v574
    %v703 = vpack.c.b16 %v579, %v577
    %v704 = vpack.c.b16 %v580, %v578
    %v705 = vpack.c.b16 %v583, %v581
    %v706 = vpack.c.b16 %v584, %v582
    %v707 = vpack.c.b16 %v587, %v585
    %v708 = vpack.c.b16 %v588, %v586
    %v709 = vpack.c.b16 %v591, %v589
    %v710 = vpack.c.b16 %v592, %v590
    %v711 = vpack.c.b16 %v595, %v593
    %v712 = vpack.c.b16 %v596, %v594
    %v713 = vpack.c.b16 %v599, %v597
    %v714 = vpack.c.b16 %v600, %v598
    %v715 = vpack.c.b16 %v603, %v601
    %v716 = vpack.c.b16 %v604, %v602
    %v717 = vpack.c.b16 %v607, %v605
    %v718 = vpack.c.b16 %v608, %v606
    %v719 = vpack.c.b16 %v611, %v609
    %v720 = vpack.c.b16 %v612, %v610
    %v721 = vpack.c.b16 %v615, %v613
    %v722 = vpack.c.b16 %v616, %v614
    %v723 = vpack.c.b16 %v619, %v617
    %v724 = vpack.c.b16 %v620, %v618
    %v725 = vpack.c.b16 %v623, %v621
    %v726 = vpack.c.b16 %v624, %v622
    %v727 = vpack.c.b16 %v627, %v625
    %v728 = vpack.c.b16 %v628, %v626
    %v729 = vpack.c.b16 %v631, %v629
    %v730 = vpack.c.b16 %v632, %v630
    %v731 = vpack.c.b16 %v635, %v633
    %v732 = vpack.c.b16 %v636, %v634
    %v733 = vpack.c.b16 %v639, %v637
    %v734 = vpack.c.b16 %v640, %v638
    %v735 = vpack.c.b16 %v643, %v641
    %v736 = vpack.c.b16 %v644, %v642
    %v737 = vpack.c.b16 %v647, %v645
    %v738 = vpack.c.b16 %v648, %v646
    %v739 = vpack.c.b16 %v651, %v649
    %v740 = vpack.c.b16 %v652, %v650
    %v741 = vpack.c.b16 %v655, %v653
    %v742 = vpack.c.b16 %v656, %v654
    %v743 = vpack.c.b16 %v659, %v657
    %v744 = vpack.c.b16 %v660, %v658
    %v745 = vpack.c.b16 %v663, %v661
    %v746 = vpack.c.b16 %v664, %v662
    %v747 = vpack.c.b16 %v667, %v665
    %v748 = vpack.c.b16 %v668, %v666
    %v749 = vpack.c.b16 %v671, %v669
    %v750 = vpack.c.b16 %v672, %v670
    %v751 = vpack.c.b16 %v675, %v673
    %v752 = vpack.c.b16 %v676, %v674
    %v753 = vpack.c.b16 %v679, %v677
    %v754 = vpack.c.b16 %v680, %v678
    %v755 = vpack.c.b16 %v683, %v681
    %v756 = vpack.c.b16 %v684, %v682
    %v757 = vpack.c.b16 %v687, %v685
    %v758 = vpack.c.b16 %v688, %v686
    %v759 = vpack.c.b16 %v691, %v689
    %v760 = vpack.c.b16 %v692, %v690
    %v761 = vpack.c.b16 %v695, %v693
    %v762 = vpack.c.b16 %v696, %v694
    %v763 = vpack.c.b16 %v699, %v697
    %v764 = vpack.c.b16 %v700, %v698
    %829 = vmatprep.subr.bf16.mxu0 %v702
    %830 = vmatpush1.bf16.msra.mxu0 %v701
    %831 = vmatprep.subr.bf16.mxu0 %v704
    %832 = vmatpush1.bf16.msra.mxu0 %v703
    %833 = vmatprep.subr.bf16.mxu0 %v706
    %834 = vmatpush1.bf16.msra.mxu0 %v705
    %835 = vmatprep.subr.bf16.mxu0 %v708
    %836 = vmatpush1.bf16.msra.mxu0 %v707
    %837 = vmatprep.subr.bf16.mxu0 %v710
    %838 = vmatpush1.bf16.msra.mxu0 %v709
    %839 = vmatprep.subr.bf16.mxu0 %v712
    %840 = vmatpush1.bf16.msra.mxu0 %v711
    %841 = vmatprep.subr.bf16.mxu0 %v714
    %842 = vmatpush1.bf16.msra.mxu0 %v713
    %843 = vmatprep.subr.bf16.mxu0 %v716
    %844 = vmatpush1.bf16.msra.mxu0 %v715
    %845 = vmatprep.subr.bf16.mxu0 %v718
    %846 = vmatpush1.bf16.msra.mxu0 %v717
    %847 = vmatprep.subr.bf16.mxu0 %v720
    %848 = vmatpush1.bf16.msra.mxu0 %v719
    %849 = vmatprep.subr.bf16.mxu0 %v722
    %850 = vmatpush1.bf16.msra.mxu0 %v721
    %851 = vmatprep.subr.bf16.mxu0 %v724
    %852 = vmatpush1.bf16.msra.mxu0 %v723
    %853 = vmatprep.subr.bf16.mxu0 %v726
    %854 = vmatpush1.bf16.msra.mxu0 %v725
    %855 = vmatprep.subr.bf16.mxu0 %v728
    %856 = vmatpush1.bf16.msra.mxu0 %v727
    %857 = vmatprep.subr.bf16.mxu0 %v730
    %858 = vmatpush1.bf16.msra.mxu0 %v729
    %859 = vmatprep.subr.bf16.mxu0 %v732
    %860 = vmatpush1.bf16.msra.mxu0 %v731
    %861 = vmatprep.mubr.bf16.mxu0 %v430
    %862 = vmatmul.mubr.bf16.gmra.mrb[0].mxu0 %v429
    %v863 = vpop.f32.mrb[0].mxu0
    %v864 = vadd.f32 %v502, %v863
    %v865 = vpop.f32.mrb[0].mxu0
    %v866 = vadd.f32 %v506, %v865
    %v867 = vpop.f32.mrb[0].mxu0
    %v868 = vpop.f32.mrb[0].mxu0
    %869 = vdwg.mxu0
    %870 = vmatprep.subr.bf16.mxu0 %v734
    %871 = vmatpush1.bf16.msra.mxu0 %v733
    %872 = vmatprep.subr.bf16.mxu0 %v736
    %873 = vmatpush1.bf16.msra.mxu0 %v735
    %874 = vmatprep.subr.bf16.mxu0 %v738
    %875 = vmatpush1.bf16.msra.mxu0 %v737
    %876 = vmatprep.subr.bf16.mxu0 %v740
    %877 = vmatpush1.bf16.msra.mxu0 %v739
    %878 = vmatprep.subr.bf16.mxu0 %v742
    %879 = vmatpush1.bf16.msra.mxu0 %v741
    %880 = vmatprep.subr.bf16.mxu0 %v744
    %881 = vmatpush1.bf16.msra.mxu0 %v743
    %882 = vmatprep.subr.bf16.mxu0 %v746
    %883 = vmatpush1.bf16.msra.mxu0 %v745
    %884 = vmatprep.subr.bf16.mxu0 %v748
    %885 = vmatpush1.bf16.msra.mxu0 %v747
    %886 = vmatprep.subr.bf16.mxu0 %v750
    %887 = vmatpush1.bf16.msra.mxu0 %v749
    %888 = vmatprep.subr.bf16.mxu0 %v752
    %889 = vmatpush1.bf16.msra.mxu0 %v751
    %890 = vmatprep.subr.bf16.mxu0 %v754
    %891 = vmatpush1.bf16.msra.mxu0 %v753
    %892 = vmatprep.subr.bf16.mxu0 %v756
    %893 = vmatpush1.bf16.msra.mxu0 %v755
    %894 = vmatprep.subr.bf16.mxu0 %v758
    %895 = vmatpush1.bf16.msra.mxu0 %v757
    %896 = vmatprep.subr.bf16.mxu0 %v760
    %897 = vmatpush1.bf16.msra.mxu0 %v759
    %898 = vmatprep.subr.bf16.mxu0 %v762
    %899 = vmatpush1.bf16.msra.mxu0 %v761
    %900 = vmatprep.subr.bf16.mxu0 %v764
    %901 = vmatpush1.bf16.msra.mxu0 %v763
    %902 = vmatprep.mubr.bf16.mxu0 %v432
    %903 = vmatmul.mubr.bf16.gmra.mrb[0].mxu0 %v431
    %v904 = vpop.f32.mrb[0].mxu0
    %v905 = vadd.f32 %v864, %v904
    %v906 = vpop.f32.mrb[0].mxu0
    %v907 = vadd.f32 %v866, %v906
    %v908 = vpop.f32.mrb[0].mxu0
    %v909 = vpop.f32.mrb[0].mxu0
    %910 = vdwg.mxu0
    %v911 = vmul.f32 %v905, %v905
    %v912 = vmul.f32 %v907, %v907
    %vm913 = vcmask 1041408
    %v914 = vsel %vm913, %v911, 0.0
    %v915 = vsel %vm913, %v912, 0.0
    %v916 = vadd.f32 %v914, %v915
    %917 = vadd.xlane.f32.xlu0 %v916
    %v918 = vpop.xlane.xlu0 %917
    %v919 = vmax.f32 %v918, 1e-24
    %v920 = vrsqrt.pop %v919
    %v921 = vmul.f32 %v905, %v920
    %v922 = vmul.f32 %v907, %v920
    %v925 = vcombine.low %v921, %v922
    %v927 = vunpack.c.l.s4 1983009808
    %v928 = vunpack.c.0.s8 %v927
    %v929 = vlaneseq
    %v930 = vshrl.u32 %v929, 7
    %v931 = vsub.s32 %v928, %v930
    %v932 = vrot.slane %v925, %v931
    %934 = vst [vmem:[#allocation8] sm:$0xf] %v932
    // Predicated region
    $region38: #{tpu_custom_call.1} parent=1 // pred_check
      _
    $region39: #{tpu_custom_call.1} parent=1 // pred_check_branch
      %936 = sbr.rel (0) target = $region41
    $region40: #{tpu_custom_call.1} parent=1 // pred_region
      %s938 = ssub.s32 64, 64
      %939 = vsyncadd [#allocation4], %s938
      %s941 = sshll.u32 [#allocation8], 4
      %s942 = int_to_ptr.vmem [resolvable:$true] %s941
      %944 = dma.vmem_to_hbm [thread:$0]  %s942, 64, %s6, [#allocation4]
    $region41: #{tpu_custom_call.1} parent=1 // pred_fallthru
      _
    // Predicated region
    $region42: #{tpu_custom_call.1} parent=1 // pred_check
      _
    $region43: #{tpu_custom_call.1} parent=1 // pred_check_branch
      %946 = sbr.rel (0) target = $region45
    $region44: #{tpu_custom_call.1} parent=1 // pred_region
      %947 = dma.done [#allocation4], 64
    $region45: #{tpu_custom_call.1} parent=1 // pred_fallthru
      _
    %948 = vsyncpa [#allocation3], 1
    %949 = vsyncpa [#allocation6], 1
    %950 = vsyncpa [#allocation4], 1

</llo_original>
